<compile_context>
chip_gen: v5e
topology: v5e:2x2
jax: 0.10.0
libtpu: 0.0.40
codegen_flags: <defaults>
</compile_context>

<pallas_src>
import functools
import math

import jax
import jax.numpy as jnp
from jax import lax
from jax.experimental import pallas as pl
from jax.experimental.pallas import tpu as pltpu


def _round_up(n, m):
    return ((n + m - 1) // m) * m


def _mix32(x):
    # lowbias32 integer hash (bijective on uint32): pure VPU xor/shift/mul.
    x = x ^ (x >> 16)
    x = x * jnp.uint32(0x7FEB352D)
    x = x ^ (x >> 15)
    x = x * jnp.uint32(0x846CA68B)
    x = x ^ (x >> 16)
    return x


def _dither_kernel(seed_ref, x_ref, o_ref, *, dither):
    rows, lanes = x_ref.shape
    half = lanes // 2

    # Globally unique per-pair counter (one Box-Muller pair -> two outputs).
    row = lax.broadcasted_iota(jnp.int32, (rows, half), 0)
    col = lax.broadcasted_iota(jnp.int32, (rows, half), 1)
    base = pl.program_id(0) * (rows * half)
    pair = (base + row * half + col).astype(jnp.uint32)

    seed = seed_ref[0].astype(jnp.uint32)
    s1 = _mix32(seed)
    s2 = _mix32(seed ^ jnp.uint32(0x9E3779B9))

    bits1 = _mix32(pair ^ s1)
    bits2 = _mix32(pair ^ s2)

    # Uniforms from top 24 bits; u1 offset away from 0 so log(u1) is finite.
    inv24 = jnp.float32(1.0 / (1 << 24))
    u1 = (bits1 >> 8).astype(jnp.int32).astype(jnp.float32) * inv24 \
        + jnp.float32(0.5 / (1 << 24))
    u2 = (bits2 >> 8).astype(jnp.int32).astype(jnp.float32) * inv24

    # Box-Muller: use BOTH outputs (z0, z1) for the two lane-halves.
    r = jnp.sqrt(jnp.float32(-2.0) * jnp.log(u1))
    theta = jnp.float32(2.0 * math.pi) * u2
    z0 = r * jnp.cos(theta)
    z1 = r * jnp.sin(theta)
    noise = jnp.concatenate([z0, z1], axis=-1)  # (rows, lanes)

    o_ref[...] = (x_ref[...] + jnp.float32(dither) * noise).astype(o_ref.dtype)


def dither_audio(x, seed, *, dither=1e-5, training=True,
                 lanes=1024, max_block_rows=512):
    """Pallas equivalent of DitherAudio.forward.

    Args:
        x: (batch, time) float32 array.
        seed: python int / int32 scalar seeding the in-kernel PRNG.
        dither: dither amount (default 1e-5, matching the module).
        training: if False, returns x unchanged (module's eval path).
    """
    if not training:
        return x

    orig_shape = x.shape
    n = x.size

    # Lane/sublane-dense slab: (rows_padded, lanes), rows multiple of 8.
    rows_total = max(1, -(-n // lanes))
    block_rows = min(max_block_rows, _round_up(rows_total, 8))
    rows_padded = _round_up(rows_total, block_rows)
    padded_n = rows_padded * lanes

    x_flat = x.reshape(-1)
    if padded_n != n:
        x_flat = jnp.pad(x_flat, (0, padded_n - n))
    x2d = x_flat.reshape(rows_padded, lanes)

    seed_arr = jnp.asarray([seed], dtype=jnp.int32)

    out2d = pl.pallas_call(
        functools.partial(_dither_kernel, dither=dither),
        out_shape=jax.ShapeDtypeStruct((rows_padded, lanes), x.dtype),
        grid_spec=pltpu.PrefetchScalarGridSpec(
            num_scalar_prefetch=1,
            grid=(rows_padded // block_rows,),
            in_specs=[pl.BlockSpec((block_rows, lanes),
                                   lambda i, seed_ref: (i, 0))],
            out_specs=pl.BlockSpec((block_rows, lanes),
                                   lambda i, seed_ref: (i, 0)),
        ),
        compiler_params=pltpu.CompilerParams(
            dimension_semantics=("parallel",),
            vmem_limit_bytes=32 * 1024 * 1024,
        ),
    )(seed_arr, x2d)

    return out2d.reshape(-1)[:n].reshape(orig_shape)


if __name__ == "__main__":
    key = jax.random.PRNGKey(0)
    batch, time = 2, 256
    x = jax.random.normal(key, (batch, time), dtype=jnp.float32)

    # Training path: x + 1e-5 * randn-like noise (in-kernel Gaussian).
    y_train = jax.block_until_ready(
        dither_audio(x, seed=1234, dither=1e-5, training=True)
    )
    # Eval path: identity.
    y_eval = jax.block_until_ready(dither_audio(x, seed=1234, training=False))

    assert y_train.shape == x.shape and y_train.dtype == x.dtype
    delta = y_train - x
    max_delta = float(jnp.max(jnp.abs(delta)))
    # Noise is scaled by 1e-5 -> tiny but (almost surely) nonzero perturbation.
    assert max_delta < 1e-3, max_delta
    assert max_delta > 0.0, "dither noise was not applied"
    assert bool(jnp.all(y_eval == x)), "eval path must be identity"

    print("KERNEL_OK")
</pallas_src>

<mosaic_0001>
module attributes {stable_mosaic.version = 11 : i64} {
  func.func @_dither_kernel(%arg0: i32, %arg1: memref<1xi32, #tpu.memory_space<smem>>, %arg2: memref<8x1024xf32, #tpu.memory_space<vmem>>, %arg3: memref<8x1024xf32, #tpu.memory_space<vmem>>) attributes {dimension_semantics = [#tpu.dimension_semantics<parallel>], iteration_bounds = array<i64: 1>, scalar_prefetch = 1 : i64, scratch_operands = 0 : i64, tpu.core_type = #tpu.core_type<tc>, window_params = [{transform_indices = @transform_0, window_bounds = array<i64: 8, 1024>}, {transform_indices = @transform_1, window_bounds = array<i64: 8, 1024>}]} {
    %0 = tpu.iota {dimensions = array<i32: 0>} : vector<8x512xi32>
    %1 = tpu.iota {dimensions = array<i32: 1>} : vector<8x512xi32>
    %c4096_i32 = arith.constant 4096 : i32
    %2 = arith.muli %arg0, %c4096_i32 : i32
    %c512_i32 = arith.constant 512 : i32
    %3 = vector.broadcast %c512_i32 : i32 to vector<8x512xi32>
    %4 = arith.muli %0, %3 : vector<8x512xi32>
    %5 = vector.broadcast %2 : i32 to vector<8x512xi32>
    %6 = arith.addi %5, %4 : vector<8x512xi32>
    %7 = arith.addi %6, %1 : vector<8x512xi32>
    %c0 = arith.constant 0 : index
    %8 = memref.load %arg1[%c0] : memref<1xi32, #tpu.memory_space<smem>>
    %c16_i32 = arith.constant 16 : i32
    %9 = arith.shrui %8, %c16_i32 : i32
    %10 = arith.xori %8, %9 : i32
    %c2146121005_i32 = arith.constant 2146121005 : i32
    %11 = arith.muli %10, %c2146121005_i32 : i32
    %c15_i32 = arith.constant 15 : i32
    %12 = arith.shrui %11, %c15_i32 : i32
    %13 = arith.xori %11, %12 : i32
    %c-2073254261_i32 = arith.constant -2073254261 : i32
    %14 = arith.muli %13, %c-2073254261_i32 : i32
    %c16_i32_0 = arith.constant 16 : i32
    %15 = arith.shrui %14, %c16_i32_0 : i32
    %16 = arith.xori %14, %15 : i32
    %c-1640531527_i32 = arith.constant -1640531527 : i32
    %17 = arith.xori %8, %c-1640531527_i32 : i32
    %c16_i32_1 = arith.constant 16 : i32
    %18 = arith.shrui %17, %c16_i32_1 : i32
    %19 = arith.xori %17, %18 : i32
    %c2146121005_i32_2 = arith.constant 2146121005 : i32
    %20 = arith.muli %19, %c2146121005_i32_2 : i32
    %c15_i32_3 = arith.constant 15 : i32
    %21 = arith.shrui %20, %c15_i32_3 : i32
    %22 = arith.xori %20, %21 : i32
    %c-2073254261_i32_4 = arith.constant -2073254261 : i32
    %23 = arith.muli %22, %c-2073254261_i32_4 : i32
    %c16_i32_5 = arith.constant 16 : i32
    %24 = arith.shrui %23, %c16_i32_5 : i32
    %25 = arith.xori %23, %24 : i32
    %26 = vector.broadcast %16 : i32 to vector<8x512xi32>
    %27 = arith.xori %7, %26 : vector<8x512xi32>
    %c16_i32_6 = arith.constant 16 : i32
    %28 = vector.broadcast %c16_i32_6 : i32 to vector<8x512xi32>
    %29 = arith.shrui %27, %28 : vector<8x512xi32>
    %30 = arith.xori %27, %29 : vector<8x512xi32>
    %c2146121005_i32_7 = arith.constant 2146121005 : i32
    %31 = vector.broadcast %c2146121005_i32_7 : i32 to vector<8x512xi32>
    %32 = arith.muli %30, %31 : vector<8x512xi32>
    %c15_i32_8 = arith.constant 15 : i32
    %33 = vector.broadcast %c15_i32_8 : i32 to vector<8x512xi32>
    %34 = arith.shrui %32, %33 : vector<8x512xi32>
    %35 = arith.xori %32, %34 : vector<8x512xi32>
    %c-2073254261_i32_9 = arith.constant -2073254261 : i32
    %36 = vector.broadcast %c-2073254261_i32_9 : i32 to vector<8x512xi32>
    %37 = arith.muli %35, %36 : vector<8x512xi32>
    %c16_i32_10 = arith.constant 16 : i32
    %38 = vector.broadcast %c16_i32_10 : i32 to vector<8x512xi32>
    %39 = arith.shrui %37, %38 : vector<8x512xi32>
    %40 = arith.xori %37, %39 : vector<8x512xi32>
    %41 = vector.broadcast %25 : i32 to vector<8x512xi32>
    %42 = arith.xori %7, %41 : vector<8x512xi32>
    %c16_i32_11 = arith.constant 16 : i32
    %43 = vector.broadcast %c16_i32_11 : i32 to vector<8x512xi32>
    %44 = arith.shrui %42, %43 : vector<8x512xi32>
    %45 = arith.xori %42, %44 : vector<8x512xi32>
    %c2146121005_i32_12 = arith.constant 2146121005 : i32
    %46 = vector.broadcast %c2146121005_i32_12 : i32 to vector<8x512xi32>
    %47 = arith.muli %45, %46 : vector<8x512xi32>
    %c15_i32_13 = arith.constant 15 : i32
    %48 = vector.broadcast %c15_i32_13 : i32 to vector<8x512xi32>
    %49 = arith.shrui %47, %48 : vector<8x512xi32>
    %50 = arith.xori %47, %49 : vector<8x512xi32>
    %c-2073254261_i32_14 = arith.constant -2073254261 : i32
    %51 = vector.broadcast %c-2073254261_i32_14 : i32 to vector<8x512xi32>
    %52 = arith.muli %50, %51 : vector<8x512xi32>
    %c16_i32_15 = arith.constant 16 : i32
    %53 = vector.broadcast %c16_i32_15 : i32 to vector<8x512xi32>
    %54 = arith.shrui %52, %53 : vector<8x512xi32>
    %55 = arith.xori %52, %54 : vector<8x512xi32>
    %c8_i32 = arith.constant 8 : i32
    %56 = vector.broadcast %c8_i32 : i32 to vector<8x512xi32>
    %57 = arith.shrui %40, %56 : vector<8x512xi32>
    %58 = arith.sitofp %57 : vector<8x512xi32> to vector<8x512xf32>
    %cst = arith.constant 5.96046448E-8 : f32
    %59 = vector.broadcast %cst : f32 to vector<8x512xf32>
    %60 = arith.mulf %58, %59 : vector<8x512xf32>
    %cst_16 = arith.constant 2.98023224E-8 : f32
    %61 = vector.broadcast %cst_16 : f32 to vector<8x512xf32>
    %62 = arith.addf %60, %61 : vector<8x512xf32>
    %c8_i32_17 = arith.constant 8 : i32
    %63 = vector.broadcast %c8_i32_17 : i32 to vector<8x512xi32>
    %64 = arith.shrui %55, %63 : vector<8x512xi32>
    %65 = arith.sitofp %64 : vector<8x512xi32> to vector<8x512xf32>
    %cst_18 = arith.constant 5.96046448E-8 : f32
    %66 = vector.broadcast %cst_18 : f32 to vector<8x512xf32>
    %67 = arith.mulf %65, %66 : vector<8x512xf32>
    %68 = math.log %62 : vector<8x512xf32>
    %cst_19 = arith.constant -2.000000e+00 : f32
    %69 = vector.broadcast %cst_19 : f32 to vector<8x512xf32>
    %70 = arith.mulf %69, %68 : vector<8x512xf32>
    %71 = math.sqrt %70 : vector<8x512xf32>
    %cst_20 = arith.constant 6.28318548 : f32
    %72 = vector.broadcast %cst_20 : f32 to vector<8x512xf32>
    %73 = arith.mulf %72, %67 : vector<8x512xf32>
    %74 = math.cos %73 : vector<8x512xf32>
    %75 = arith.mulf %71, %74 : vector<8x512xf32>
    %76 = math.sin %73 : vector<8x512xf32>
    %77 = arith.mulf %71, %76 : vector<8x512xf32>
    %78 = tpu.concatenate %75, %77 in 1 : vector<8x512xf32>, vector<8x512xf32> -> vector<8x1024xf32>
    %c0_21 = arith.constant 0 : index
    %c0_22 = arith.constant 0 : index
    %79 = vector.load %arg2[%c0_21, %c0_22] : memref<8x1024xf32, #tpu.memory_space<vmem>>, vector<8x1024xf32>
    %cst_23 = arith.constant 9.99999974E-6 : f32
    %80 = vector.broadcast %cst_23 : f32 to vector<8x1024xf32>
    %81 = arith.mulf %80, %78 : vector<8x1024xf32>
    %82 = arith.addf %79, %81 : vector<8x1024xf32>
    %c0_24 = arith.constant 0 : index
    %c0_25 = arith.constant 0 : index
    %83 = vector.load %arg3[%c0_24, %c0_25] : memref<8x1024xf32, #tpu.memory_space<vmem>>, vector<8x1024xf32>
    tpu.vector_store %arg3[%c0_24, %c0_25], %82 {strides = array<i32>} : memref<8x1024xf32, #tpu.memory_space<vmem>>, vector<8x1024xf32>,
    return
  }
  func.func @transform_0(%arg0: i32, %arg1: memref<1xi32, #tpu.memory_space<smem>>) -> (i32, i32) {
    %c0_i32 = arith.constant 0 : i32
    %c0_i32_0 = arith.constant 0 : i32
    return %arg0, %c0_i32 : i32, i32
  }
  func.func @transform_1(%arg0: i32, %arg1: memref<1xi32, #tpu.memory_space<smem>>) -> (i32, i32) {
    %c0_i32 = arith.constant 0 : i32
    %c0_i32_0 = arith.constant 0 : i32
    return %arg0, %c0_i32 : i32, i32
  }
}

</mosaic_0001>

<llo_original>
// kernel: tpu_custom_call.1
$region0: #{tpu_custom_call.1}
  #allocation0 [shape = 'u32[]', space=smem, size = 0x4, offset = 0x4, fixed_abs, tag = 'smem constant byte address 0x4 - core index']
  #allocation1 [shape = 'u32[72,128]{1,0:T(1,128)}', space=vmem, size = 0x9000, scoped, tag = 'internal scratch']
  #allocation2 [shape = 's32[1]{0}', space=sflag, size = 0x4, scoped, tag = 'scoped memory for tpu_custom_call.1']
  #allocation3 [shape = 's32[1]{0:T(128)S(6)}', space=smem, size = 0x200, scoped, tag = 'prefetched SMEM operand 0']
  %s0 = inlined_call_operand.<no memory space> [shape: s32[1], index: 0, kind: input, shape index: {}]
  %s1 = inlined_call_operand.hbm [shape: f32[8,1024], index: 1, kind: input, shape index: {}]
  %s2 = inlined_call_operand.hbm [shape: f32[8,1024], index: 2, kind: output, shape index: {}]
  %s3 = sld [smem:[#allocation0]]
  $region18: #{tpu_custom_call.1} parent=0
    _
  %s5 = ssub.s32 1, %s3
  %s6 = scalar_select 0, %s5, %s3
  %7 = sst [smem:[#allocation3]] %s0
  $region1: #{tpu_custom_call.1} parent=0
    #allocation4 [shape = 'u8[32768]{0}', space=vmem, size = 0x8000, scoped, tag = 'input window, operand 1, single buffered']
    #allocation5 [shape = 's32[1]{0}', space=sflag, size = 0x4, scoped, tag = 'scoped memory for tpu_custom_call.1']
    #allocation6 [shape = 's32[1]{0}', space=sflag, size = 0x4, scoped, tag = 'scoped memory for tpu_custom_call.1']
    #allocation7 [shape = 'u8[32768]{0}', space=vmem, size = 0x8000, scoped, tag = 'output window, operand 0, single buffered']
    %8 = vsyncpa [#allocation5], 0
    %9 = vsyncpa [#allocation6], 0
    // Predicated region
    $region2: #{tpu_custom_call.1} parent=1 // pred_check
      _
    $region3: #{tpu_custom_call.1} parent=1 // pred_check_branch
      %11 = sbr.rel (0) target = $region5
    $region4: #{tpu_custom_call.1} parent=1 // pred_region
      %13 = vsyncadd [#allocation5], 0
      %s15 = sshll.u32 %s1, 4
      %s16 = int_to_ptr.hbm [resolvable:$true] %s15
      %s17 = sshll.u32 [#allocation4], 4
      %s18 = int_to_ptr.vmem [resolvable:$true] %s17
      %20 = dma.hbm_to_vmem [thread:$0]  %s16, 1024, %s18, [#allocation5]
    $region5: #{tpu_custom_call.1} parent=1 // pred_fallthru
      _
    // Predicated region
    $region6: #{tpu_custom_call.1} parent=1 // pred_check
      _
    $region7: #{tpu_custom_call.1} parent=1 // pred_check_branch
      %22 = sbr.rel (0) target = $region9
    $region8: #{tpu_custom_call.1} parent=1 // pred_region
      %24 = dma.done [#allocation5], 1024
    $region9: #{tpu_custom_call.1} parent=1 // pred_fallthru
      _
    %v25 = vlaneseq
    %v26 = vshrl.u32 %v25, 7
    %v27 = vlaneseq
    %v28 = vand.u32 %v27, 127
    %v29 = vadd.s32 %v28, 128
    %v30 = vadd.s32 %v28, 256
    %v31 = vadd.s32 %v28, 384
    %s32 = smul.u32 0, 4096
    %v33 = vmul.u32 %v26, 512
    %v34 = vstv %s32
    %v35 = vadd.s32 %v34, %v33
    %v36 = vadd.s32 %v35, %v28
    %v37 = vadd.s32 %v35, %v29
    %v38 = vadd.s32 %v35, %v30
    %v39 = vadd.s32 %v35, %v31
    %s40 = sld [smem:[#allocation3]]
    %s41 = sshrl.u32 %s40, 16
    %s42 = sxor.u32 %s40, %s41
    %s43 = smul.u32 %s42, 2146121005
    %s44 = sshrl.u32 %s43, 15
    %s45 = sxor.u32 %s43, %s44
    %s46 = smul.u32 %s45, 2221713035
    %s47 = sshrl.u32 %s46, 16
    %s48 = sxor.u32 %s46, %s47
    %s49 = sxor.u32 %s40, 2654435769
    %s50 = sshrl.u32 %s49, 16
    %s51 = sxor.u32 %s49, %s50
    %s52 = smul.u32 %s51, 2146121005
    %s53 = sshrl.u32 %s52, 15
    %s54 = sxor.u32 %s52, %s53
    %s55 = smul.u32 %s54, 2221713035
    %s56 = sshrl.u32 %s55, 16
    %s57 = sxor.u32 %s55, %s56
    %v58 = vstv %s48
    %v59 = vxor.u32 %v36, %v58
    %v60 = vxor.u32 %v37, %v58
    %v61 = vxor.u32 %v38, %v58
    %v62 = vxor.u32 %v39, %v58
    %v63 = vshrl.u32 %v59, 16
    %v64 = vshrl.u32 %v60, 16
    %v65 = vshrl.u32 %v61, 16
    %v66 = vshrl.u32 %v62, 16
    %v67 = vxor.u32 %v59, %v63
    %v68 = vxor.u32 %v60, %v64
    %v69 = vxor.u32 %v61, %v65
    %v70 = vxor.u32 %v62, %v66
    %v71 = vmul.u32 %v67, 2146121005
    %v72 = vmul.u32 %v68, 2146121005
    %v73 = vmul.u32 %v69, 2146121005
    %v74 = vmul.u32 %v70, 2146121005
    %v75 = vshrl.u32 %v71, 15
    %v76 = vshrl.u32 %v72, 15
    %v77 = vshrl.u32 %v73, 15
    %v78 = vshrl.u32 %v74, 15
    %v79 = vxor.u32 %v71, %v75
    %v80 = vxor.u32 %v72, %v76
    %v81 = vxor.u32 %v73, %v77
    %v82 = vxor.u32 %v74, %v78
    %v83 = vmul.u32 %v79, 2221713035
    %v84 = vmul.u32 %v80, 2221713035
    %v85 = vmul.u32 %v81, 2221713035
    %v86 = vmul.u32 %v82, 2221713035
    %v87 = vshrl.u32 %v83, 16
    %v88 = vshrl.u32 %v84, 16
    %v89 = vshrl.u32 %v85, 16
    %v90 = vshrl.u32 %v86, 16
    %v91 = vxor.u32 %v83, %v87
    %v92 = vxor.u32 %v84, %v88
    %v93 = vxor.u32 %v85, %v89
    %v94 = vxor.u32 %v86, %v90
    %v95 = vstv %s57
    %v96 = vxor.u32 %v36, %v95
    %v97 = vxor.u32 %v37, %v95
    %v98 = vxor.u32 %v38, %v95
    %v99 = vxor.u32 %v39, %v95
    %v100 = vshrl.u32 %v96, 16
    %v101 = vshrl.u32 %v97, 16
    %v102 = vshrl.u32 %v98, 16
    %v103 = vshrl.u32 %v99, 16
    %v104 = vxor.u32 %v96, %v100
    %v105 = vxor.u32 %v97, %v101
    %v106 = vxor.u32 %v98, %v102
    %v107 = vxor.u32 %v99, %v103
    %v108 = vmul.u32 %v104, 2146121005
    %v109 = vmul.u32 %v105, 2146121005
    %v110 = vmul.u32 %v106, 2146121005
    %v111 = vmul.u32 %v107, 2146121005
    %v112 = vshrl.u32 %v108, 15
    %v113 = vshrl.u32 %v109, 15
    %v114 = vshrl.u32 %v110, 15
    %v115 = vshrl.u32 %v111, 15
    %v116 = vxor.u32 %v108, %v112
    %v117 = vxor.u32 %v109, %v113
    %v118 = vxor.u32 %v110, %v114
    %v119 = vxor.u32 %v111, %v115
    %v120 = vmul.u32 %v116, 2221713035
    %v121 = vmul.u32 %v117, 2221713035
    %v122 = vmul.u32 %v118, 2221713035
    %v123 = vmul.u32 %v119, 2221713035
    %v124 = vshrl.u32 %v120, 16
    %v125 = vshrl.u32 %v121, 16
    %v126 = vshrl.u32 %v122, 16
    %v127 = vshrl.u32 %v123, 16
    %v128 = vxor.u32 %v120, %v124
    %v129 = vxor.u32 %v121, %v125
    %v130 = vxor.u32 %v122, %v126
    %v131 = vxor.u32 %v123, %v127
    %v132 = vshrl.u32 %v91, 8
    %v133 = vshrl.u32 %v92, 8
    %v134 = vshrl.u32 %v93, 8
    %v135 = vshrl.u32 %v94, 8
    %v136 = vcvt.s32.f32 %v132
    %v137 = vcvt.s32.f32 %v133
    %v138 = vcvt.s32.f32 %v134
    %v139 = vcvt.s32.f32 %v135
    %v140 = vmul.f32 %v136, 5.9604645e-08
    %v141 = vmul.f32 %v137, 5.9604645e-08
    %v142 = vmul.f32 %v138, 5.9604645e-08
    %v143 = vmul.f32 %v139, 5.9604645e-08
    %v144 = vadd.f32 %v140, 2.9802322e-08
    %v145 = vadd.f32 %v141, 2.9802322e-08
    %v146 = vadd.f32 %v142, 2.9802322e-08
    %v147 = vadd.f32 %v143, 2.9802322e-08
    %v148 = vshrl.u32 %v128, 8
    %v149 = vshrl.u32 %v129, 8
    %v150 = vshrl.u32 %v130, 8
    %v151 = vshrl.u32 %v131, 8
    %v152 = vcvt.s32.f32 %v148
    %v153 = vcvt.s32.f32 %v149
    %v154 = vcvt.s32.f32 %v150
    %v155 = vcvt.s32.f32 %v151
    %v156 = vmul.f32 %v152, 5.9604645e-08
    %v157 = vmul.f32 %v153, 5.9604645e-08
    %v158 = vmul.f32 %v154, 5.9604645e-08
    %v159 = vmul.f32 %v155, 5.9604645e-08
    %v160 = vlog2.pop %v144
    %v161 = vmul.f32 %v160, 0.6931472
    %v162 = vlog2.pop %v145
    %v163 = vmul.f32 %v162, 0.6931472
    %v164 = vlog2.pop %v146
    %v165 = vmul.f32 %v164, 0.6931472
    %v166 = vlog2.pop %v147
    %v167 = vmul.f32 %v166, 0.6931472
    %v168 = vmul.f32 %v161, -2.0
    %v169 = vmul.f32 %v163, -2.0
    %v170 = vmul.f32 %v165, -2.0
    %v171 = vmul.f32 %v167, -2.0
    %v172 = vrsqrt.pop %v168
    %v173 = vmul.f32 %v172, %v168
    %v174 = vmul.f32 %v173, %v172
    %v175 = vmul.f32 0.5, %v174
    %v176 = vsub.f32 1.5, %v175
    %v177 = vmul.f32 %v172, %v176
    %v178 = vmul.f32 %v168, %v177
    %vm179 = vcmp.eq.f32.partialorder %v168, inf
    %v180 = vsel %vm179, %v168, %v178
    %vm181 = vcmp.eq.f32.partialorder %v168, 0.0
    %v182 = vand.u32 %v168, 2147483648
    %v183 = vsel %vm181, %v182, %v180
    %v184 = vrsqrt.pop %v169
    %v185 = vmul.f32 %v184, %v169
    %v186 = vmul.f32 %v185, %v184
    %v187 = vmul.f32 0.5, %v186
    %v188 = vsub.f32 1.5, %v187
    %v189 = vmul.f32 %v184, %v188
    %v190 = vmul.f32 %v169, %v189
    %vm191 = vcmp.eq.f32.partialorder %v169, inf
    %v192 = vsel %vm191, %v169, %v190
    %vm193 = vcmp.eq.f32.partialorder %v169, 0.0
    %v194 = vand.u32 %v169, 2147483648
    %v195 = vsel %vm193, %v194, %v192
    %v196 = vrsqrt.pop %v170
    %v197 = vmul.f32 %v196, %v170
    %v198 = vmul.f32 %v197, %v196
    %v199 = vmul.f32 0.5, %v198
    %v200 = vsub.f32 1.5, %v199
    %v201 = vmul.f32 %v196, %v200
    %v202 = vmul.f32 %v170, %v201
    %vm203 = vcmp.eq.f32.partialorder %v170, inf
    %v204 = vsel %vm203, %v170, %v202
    %vm205 = vcmp.eq.f32.partialorder %v170, 0.0
    %v206 = vand.u32 %v170, 2147483648
    %v207 = vsel %vm205, %v206, %v204
    %v208 = vrsqrt.pop %v171
    %v209 = vmul.f32 %v208, %v171
    %v210 = vmul.f32 %v209, %v208
    %v211 = vmul.f32 0.5, %v210
    %v212 = vsub.f32 1.5, %v211
    %v213 = vmul.f32 %v208, %v212
    %v214 = vmul.f32 %v171, %v213
    %vm215 = vcmp.eq.f32.partialorder %v171, inf
    %v216 = vsel %vm215, %v171, %v214
    %vm217 = vcmp.eq.f32.partialorder %v171, 0.0
    %v218 = vand.u32 %v171, 2147483648
    %v219 = vsel %vm217, %v218, %v216
    %v220 = vmul.f32 %v156, 6.2831855
    %v221 = vmul.f32 %v157, 6.2831855
    %v222 = vmul.f32 %v158, 6.2831855
    %v223 = vmul.f32 %v159, 6.2831855
    %v224 = vand.u32 2147483647, %v220
    %vm225 = vcmp.le.f32.partialorder %v224, 0.7853982
    %vm226 = vcmp.lt.s32.totalorder %v220, 0
    %v227 = vand.u32 %v220, 2139095040
    %v228 = vshrl.u32 %v227, 23
    %v229 = vsub.s32 %v228, 127
    %v230 = vand.u32 2147483647, %v220
    %v231 = vand.u32 %v230, 8388607
    %v232 = vor.u32 %v231, 8388608
    %v233 = vsub.s32 0, %v232
    %v234 = vadd.s32 %v229, 1
    %vm235 = vcmp.gt.s32.totalorder %v234, 0
    %v236 = vsel %vm235, %v234, 0
    %v237 = vshrl.u32 %v236, 5
    %v238 = vand.u32 %v236, 31
    %v239 = vsub.s32 32, %v238
    %v240 = vshrl.u32 683565275, %v239
    %v241 = vshll.u32 683565275, %v238
    %v242 = vshrl.u32 2475754826, %v239
    %v243 = vor.u32 %v241, %v242
    %v244 = vshll.u32 2475754826, %v238
    %v245 = vshrl.u32 2131351028, %v239
    %v246 = vor.u32 %v244, %v245
    %v247 = vshll.u32 2131351028, %v238
    %v248 = vshrl.u32 2102212464, %v239
    %v249 = vor.u32 %v247, %v248
    %v250 = vshll.u32 2102212464, %v238
    %v251 = vshrl.u32 920167782, %v239
    %v252 = vor.u32 %v250, %v251
    %v253 = vshll.u32 920167782, %v238
    %v254 = vshrl.u32 1326507024, %v239
    %v255 = vor.u32 %v253, %v254
    %vm256 = vcmp.lt.s32.totalorder %v237, 1
    %vm257 = vcmp.lt.s32.totalorder %v237, 2
    %vm258 = vcmp.lt.s32.totalorder %v237, 3
    %vm259 = vcmp.lt.s32.totalorder %v237, 4
    %v260 = vsel %vm256, %v240, %v243
    %v261 = vsel %vm259, %v249, 2102212464
    %v262 = vsel %vm258, %v246, %v261
    %v263 = vsel %vm257, %v260, %v262
    %v264 = vsel %vm256, %v243, %v246
    %v265 = vsel %vm259, %v252, 920167782
    %v266 = vsel %vm258, %v249, %v265
    %v267 = vsel %vm257, %v264, %v266
    %v268 = vsel %vm256, %v246, %v249
    %v269 = vsel %vm259, %v255, 1326507024
    %v270 = vsel %vm258, %v252, %v269
    %v271 = vsel %vm257, %v268, %v270
    %v272 = vshll.u32 %v232, 8
    %v273 = vand.u32 %v272, 65535
    %v274 = vshrl.u32 %v272, 16
    %v275 = vand.u32 %v271, 65535
    %v276 = vshrl.u32 %v271, 16
    %v277 = vmul.u32 %v273, %v275
    %v278 = vmul.u32 %v273, %v276
    %v279 = vmul.u32 %v274, %v275
    %v280 = vmul.u32 %v274, %v276
    %v281 = vshll.u32 %v278, 16
    %v282 = vshrl.u32 %v278, 16
    %v283 = vshll.u32 %v279, 16
    %v284 = vshrl.u32 %v279, 16
    %vm285 = vc.u32 %v277, %v281
    %v286 = vsel %vm285, 1, 0
    %v287 = vadd.s32 %v277, %v281
    %v288 = vadd.s32 %v280, %v286
    %vm289 = vc.u32 %v287, %v283
    %v290 = vsel %vm289, 1, 0
    %v291 = vadd.s32 %v287, %v283
    %v292 = vadd.s32 %v288, %v290
    %v293 = vadd.s32 %v292, %v282
    %v294 = vadd.s32 %v293, %v284
    %v295 = vand.u32 %v272, 65535
    %v296 = vshrl.u32 %v272, 16
    %v297 = vand.u32 %v267, 65535
    %v298 = vshrl.u32 %v267, 16
    %v299 = vmul.u32 %v295, %v297
    %v300 = vmul.u32 %v295, %v298
    %v301 = vmul.u32 %v296, %v297
    %v302 = vmul.u32 %v296, %v298
    %v303 = vshll.u32 %v300, 16
    %v304 = vshrl.u32 %v300, 16
    %v305 = vshll.u32 %v301, 16
    %v306 = vshrl.u32 %v301, 16
    %vm307 = vc.u32 %v299, %v303
    %v308 = vsel %vm307, 1, 0
    %v309 = vadd.s32 %v299, %v303
    %v310 = vadd.s32 %v302, %v308
    %vm311 = vc.u32 %v309, %v305
    %v312 = vsel %vm311, 1, 0
    %v313 = vadd.s32 %v309, %v305
    %v314 = vadd.s32 %v310, %v312
    %v315 = vadd.s32 %v314, %v304
    %v316 = vadd.s32 %v315, %v306
    %v317 = vmul.u32 %v272, %v263
    %v318 = vadd.s32 %v294, %v313
    %vm319 = vc.u32 %v294, %v313
    %v320 = vadd.s32 %v316, 1
    %v321 = vsel %vm319, %v320, %v316
    %v322 = vadd.s32 %v317, %v321
    %v323 = vadd.s32 %v322, 536870912
    %v324 = vshrl.u32 %v323, 30
    %v325 = vshll.u32 %v324, 30
    %v326 = vsub.s32 %v322, %v325
    %vm327 = vcmp.lt.s32.totalorder %v326, 0
    %v328 = vsub.s32 0, %v326
    %v329 = vsel %vm327, %v328, %v326
    %v330 = vclz %v329
    %v331 = vsub.s32 %v330, 2
    %vm332 = vcmp.gt.s32.totalorder 0, %v331
    %v333 = vsel %vm332, 0, %v331
    %v334 = vsub.s32 32, %v333
    %v335 = vshll.u32 %v326, %v333
    %v336 = vshrl.u32 %v318, %v334
    %v337 = vor.u32 %v335, %v336
    %v338 = vsub.s32 4294967266, %v333
    %v339 = vadd.s32 %v338, 127
    %v340 = vshll.u32 %v339, 23
    %v341 = vor.u32 4788187, %v340
    %v342 = vand.u32 2147483647, %v341
    %v344 = vcvt.s32.f32 %v337
    %v345 = vmul.f32 %v344, %v342
    %v346 = vxor.u32 %v345, 2147483648
    %v347 = vsel %vm226, %v346, %v345
    %v348 = vsub.s32 4, %v324
    %v349 = vsel %vm226, %v348, %v324
    %v350 = vsel %vm225, %v220, %v347
    %v351 = vsel %vm225, 0, %v349
    %v352 = vmul.f32 %v350, %v350
    %v353 = vmul.f32 %v352, -0.001358992
    %v354 = vadd.f32 %v353, 0.041655596
    %v355 = vmul.f32 %v352, %v354
    %v356 = vadd.f32 %v355, -0.4999988
    %v357 = vmul.f32 %v352, %v356
    %v358 = vadd.f32 1.0, %v357
    %v359 = vmul.f32 %v350, %v350
    %v360 = vmul.f32 %v359, -0.00019511016
    %v361 = vadd.f32 %v360, 0.008332121
    %v362 = vmul.f32 %v359, %v361
    %v363 = vadd.f32 %v362, -0.16666654
    %v364 = vmul.f32 %v359, %v363
    %v365 = vadd.f32 %v364, 1.0
    %v366 = vmul.f32 %v365, %v350
    %vm367 = vweird.f32 %v220
    %v368 = vand.u32 %v351, 3
    %vm369 = vcmp.lt.s32.totalorder %v368, 2
    %vm370 = vcmp.eq.s32.totalorder %v368, 0
    %v371 = vxor.u32 %v366, 2147483648
    %v372 = vsel %vm370, %v358, %v371
    %vm373 = vcmp.eq.s32.totalorder %v368, 2
    %v374 = vxor.u32 %v358, 2147483648
    %v375 = vsel %vm373, %v374, %v366
    %v376 = vsel %vm369, %v372, %v375
    %v377 = vsel %vm367, nan, %v376
    %v378 = vand.u32 2147483647, %v221
    %vm379 = vcmp.le.f32.partialorder %v378, 0.7853982
    %vm380 = vcmp.lt.s32.totalorder %v221, 0
    %v381 = vand.u32 %v221, 2139095040
    %v382 = vshrl.u32 %v381, 23
    %v383 = vsub.s32 %v382, 127
    %v384 = vand.u32 2147483647, %v221
    %v385 = vand.u32 %v384, 8388607
    %v386 = vor.u32 %v385, 8388608
    %v387 = vsub.s32 0, %v386
    %v388 = vadd.s32 %v383, 1
    %vm389 = vcmp.gt.s32.totalorder %v388, 0
    %v390 = vsel %vm389, %v388, 0
    %v391 = vshrl.u32 %v390, 5
    %v392 = vand.u32 %v390, 31
    %v393 = vsub.s32 32, %v392
    %v394 = vshrl.u32 683565275, %v393
    %v395 = vshll.u32 683565275, %v392
    %v396 = vshrl.u32 2475754826, %v393
    %v397 = vor.u32 %v395, %v396
    %v398 = vshll.u32 2475754826, %v392
    %v399 = vshrl.u32 2131351028, %v393
    %v400 = vor.u32 %v398, %v399
    %v401 = vshll.u32 2131351028, %v392
    %v402 = vshrl.u32 2102212464, %v393
    %v403 = vor.u32 %v401, %v402
    %v404 = vshll.u32 2102212464, %v392
    %v405 = vshrl.u32 920167782, %v393
    %v406 = vor.u32 %v404, %v405
    %v407 = vshll.u32 920167782, %v392
    %v408 = vshrl.u32 1326507024, %v393
    %v409 = vor.u32 %v407, %v408
    %vm410 = vcmp.lt.s32.totalorder %v391, 1
    %vm411 = vcmp.lt.s32.totalorder %v391, 2
    %vm412 = vcmp.lt.s32.totalorder %v391, 3
    %vm413 = vcmp.lt.s32.totalorder %v391, 4
    %v414 = vsel %vm410, %v394, %v397
    %v415 = vsel %vm413, %v403, 2102212464
    %v416 = vsel %vm412, %v400, %v415
    %v417 = vsel %vm411, %v414, %v416
    %v418 = vsel %vm410, %v397, %v400
    %v419 = vsel %vm413, %v406, 920167782
    %v420 = vsel %vm412, %v403, %v419
    %v421 = vsel %vm411, %v418, %v420
    %v422 = vsel %vm410, %v400, %v403
    %v423 = vsel %vm413, %v409, 1326507024
    %v424 = vsel %vm412, %v406, %v423
    %v425 = vsel %vm411, %v422, %v424
    %v426 = vshll.u32 %v386, 8
    %v427 = vand.u32 %v426, 65535
    %v428 = vshrl.u32 %v426, 16
    %v429 = vand.u32 %v425, 65535
    %v430 = vshrl.u32 %v425, 16
    %v431 = vmul.u32 %v427, %v429
    %v432 = vmul.u32 %v427, %v430
    %v433 = vmul.u32 %v428, %v429
    %v434 = vmul.u32 %v428, %v430
    %v435 = vshll.u32 %v432, 16
    %v436 = vshrl.u32 %v432, 16
    %v437 = vshll.u32 %v433, 16
    %v438 = vshrl.u32 %v433, 16
    %vm439 = vc.u32 %v431, %v435
    %v440 = vsel %vm439, 1, 0
    %v441 = vadd.s32 %v431, %v435
    %v442 = vadd.s32 %v434, %v440
    %vm443 = vc.u32 %v441, %v437
    %v444 = vsel %vm443, 1, 0
    %v445 = vadd.s32 %v441, %v437
    %v446 = vadd.s32 %v442, %v444
    %v447 = vadd.s32 %v446, %v436
    %v448 = vadd.s32 %v447, %v438
    %v449 = vand.u32 %v426, 65535
    %v450 = vshrl.u32 %v426, 16
    %v451 = vand.u32 %v421, 65535
    %v452 = vshrl.u32 %v421, 16
    %v453 = vmul.u32 %v449, %v451
    %v454 = vmul.u32 %v449, %v452
    %v455 = vmul.u32 %v450, %v451
    %v456 = vmul.u32 %v450, %v452
    %v457 = vshll.u32 %v454, 16
    %v458 = vshrl.u32 %v454, 16
    %v459 = vshll.u32 %v455, 16
    %v460 = vshrl.u32 %v455, 16
    %vm461 = vc.u32 %v453, %v457
    %v462 = vsel %vm461, 1, 0
    %v463 = vadd.s32 %v453, %v457
    %v464 = vadd.s32 %v456, %v462
    %vm465 = vc.u32 %v463, %v459
    %v466 = vsel %vm465, 1, 0
    %v467 = vadd.s32 %v463, %v459
    %v468 = vadd.s32 %v464, %v466
    %v469 = vadd.s32 %v468, %v458
    %v470 = vadd.s32 %v469, %v460
    %v471 = vmul.u32 %v426, %v417
    %v472 = vadd.s32 %v448, %v467
    %vm473 = vc.u32 %v448, %v467
    %v474 = vadd.s32 %v470, 1
    %v475 = vsel %vm473, %v474, %v470
    %v476 = vadd.s32 %v471, %v475
    %v477 = vadd.s32 %v476, 536870912
    %v478 = vshrl.u32 %v477, 30
    %v479 = vshll.u32 %v478, 30
    %v480 = vsub.s32 %v476, %v479
    %vm481 = vcmp.lt.s32.totalorder %v480, 0
    %v482 = vsub.s32 0, %v480
    %v483 = vsel %vm481, %v482, %v480
    %v484 = vclz %v483
    %v485 = vsub.s32 %v484, 2
    %vm486 = vcmp.gt.s32.totalorder 0, %v485
    %v487 = vsel %vm486, 0, %v485
    %v488 = vsub.s32 32, %v487
    %v489 = vshll.u32 %v480, %v487
    %v490 = vshrl.u32 %v472, %v488
    %v491 = vor.u32 %v489, %v490
    %v492 = vsub.s32 4294967266, %v487
    %v493 = vadd.s32 %v492, 127
    %v494 = vshll.u32 %v493, 23
    %v495 = vor.u32 4788187, %v494
    %v496 = vand.u32 2147483647, %v495
    %v498 = vcvt.s32.f32 %v491
    %v499 = vmul.f32 %v498, %v496
    %v500 = vxor.u32 %v499, 2147483648
    %v501 = vsel %vm380, %v500, %v499
    %v502 = vsub.s32 4, %v478
    %v503 = vsel %vm380, %v502, %v478
    %v504 = vsel %vm379, %v221, %v501
    %v505 = vsel %vm379, 0, %v503
    %v506 = vmul.f32 %v504, %v504
    %v507 = vmul.f32 %v506, -0.001358992
    %v508 = vadd.f32 %v507, 0.041655596
    %v509 = vmul.f32 %v506, %v508
    %v510 = vadd.f32 %v509, -0.4999988
    %v511 = vmul.f32 %v506, %v510
    %v512 = vadd.f32 1.0, %v511
    %v513 = vmul.f32 %v504, %v504
    %v514 = vmul.f32 %v513, -0.00019511016
    %v515 = vadd.f32 %v514, 0.008332121
    %v516 = vmul.f32 %v513, %v515
    %v517 = vadd.f32 %v516, -0.16666654
    %v518 = vmul.f32 %v513, %v517
    %v519 = vadd.f32 %v518, 1.0
    %v520 = vmul.f32 %v519, %v504
    %vm521 = vweird.f32 %v221
    %v522 = vand.u32 %v505, 3
    %vm523 = vcmp.lt.s32.totalorder %v522, 2
    %vm524 = vcmp.eq.s32.totalorder %v522, 0
    %v525 = vxor.u32 %v520, 2147483648
    %v526 = vsel %vm524, %v512, %v525
    %vm527 = vcmp.eq.s32.totalorder %v522, 2
    %v528 = vxor.u32 %v512, 2147483648
    %v529 = vsel %vm527, %v528, %v520
    %v530 = vsel %vm523, %v526, %v529
    %v531 = vsel %vm521, nan, %v530
    %v532 = vand.u32 2147483647, %v222
    %vm533 = vcmp.le.f32.partialorder %v532, 0.7853982
    %vm534 = vcmp.lt.s32.totalorder %v222, 0
    %v535 = vand.u32 %v222, 2139095040
    %v536 = vshrl.u32 %v535, 23
    %v537 = vsub.s32 %v536, 127
    %v538 = vand.u32 2147483647, %v222
    %v539 = vand.u32 %v538, 8388607
    %v540 = vor.u32 %v539, 8388608
    %v541 = vsub.s32 0, %v540
    %v542 = vadd.s32 %v537, 1
    %vm543 = vcmp.gt.s32.totalorder %v542, 0
    %v544 = vsel %vm543, %v542, 0
    %v545 = vshrl.u32 %v544, 5
    %v546 = vand.u32 %v544, 31
    %v547 = vsub.s32 32, %v546
    %v548 = vshrl.u32 683565275, %v547
    %v549 = vshll.u32 683565275, %v546
    %v550 = vshrl.u32 2475754826, %v547
    %v551 = vor.u32 %v549, %v550
    %v552 = vshll.u32 2475754826, %v546
    %v553 = vshrl.u32 2131351028, %v547
    %v554 = vor.u32 %v552, %v553
    %v555 = vshll.u32 2131351028, %v546
    %v556 = vshrl.u32 2102212464, %v547
    %v557 = vor.u32 %v555, %v556
    %v558 = vshll.u32 2102212464, %v546
    %v559 = vshrl.u32 920167782, %v547
    %v560 = vor.u32 %v558, %v559
    %v561 = vshll.u32 920167782, %v546
    %v562 = vshrl.u32 1326507024, %v547
    %v563 = vor.u32 %v561, %v562
    %vm564 = vcmp.lt.s32.totalorder %v545, 1
    %vm565 = vcmp.lt.s32.totalorder %v545, 2
    %vm566 = vcmp.lt.s32.totalorder %v545, 3
    %vm567 = vcmp.lt.s32.totalorder %v545, 4
    %v568 = vsel %vm564, %v548, %v551
    %v569 = vsel %vm567, %v557, 2102212464
    %v570 = vsel %vm566, %v554, %v569
    %v571 = vsel %vm565, %v568, %v570
    %v572 = vsel %vm564, %v551, %v554
    %v573 = vsel %vm567, %v560, 920167782
    %v574 = vsel %vm566, %v557, %v573
    %v575 = vsel %vm565, %v572, %v574
    %v576 = vsel %vm564, %v554, %v557
    %v577 = vsel %vm567, %v563, 1326507024
    %v578 = vsel %vm566, %v560, %v577
    %v579 = vsel %vm565, %v576, %v578
    %v580 = vshll.u32 %v540, 8
    %v581 = vand.u32 %v580, 65535
    %v582 = vshrl.u32 %v580, 16
    %v583 = vand.u32 %v579, 65535
    %v584 = vshrl.u32 %v579, 16
    %v585 = vmul.u32 %v581, %v583
    %v586 = vmul.u32 %v581, %v584
    %v587 = vmul.u32 %v582, %v583
    %v588 = vmul.u32 %v582, %v584
    %v589 = vshll.u32 %v586, 16
    %v590 = vshrl.u32 %v586, 16
    %v591 = vshll.u32 %v587, 16
    %v592 = vshrl.u32 %v587, 16
    %vm593 = vc.u32 %v585, %v589
    %v594 = vsel %vm593, 1, 0
    %v595 = vadd.s32 %v585, %v589
    %v596 = vadd.s32 %v588, %v594
    %vm597 = vc.u32 %v595, %v591
    %v598 = vsel %vm597, 1, 0
    %v599 = vadd.s32 %v595, %v591
    %v600 = vadd.s32 %v596, %v598
    %v601 = vadd.s32 %v600, %v590
    %v602 = vadd.s32 %v601, %v592
    %v603 = vand.u32 %v580, 65535
    %v604 = vshrl.u32 %v580, 16
    %v605 = vand.u32 %v575, 65535
    %v606 = vshrl.u32 %v575, 16
    %v607 = vmul.u32 %v603, %v605
    %v608 = vmul.u32 %v603, %v606
    %v609 = vmul.u32 %v604, %v605
    %v610 = vmul.u32 %v604, %v606
    %v611 = vshll.u32 %v608, 16
    %v612 = vshrl.u32 %v608, 16
    %v613 = vshll.u32 %v609, 16
    %v614 = vshrl.u32 %v609, 16
    %vm615 = vc.u32 %v607, %v611
    %v616 = vsel %vm615, 1, 0
    %v617 = vadd.s32 %v607, %v611
    %v618 = vadd.s32 %v610, %v616
    %vm619 = vc.u32 %v617, %v613
    %v620 = vsel %vm619, 1, 0
    %v621 = vadd.s32 %v617, %v613
    %v622 = vadd.s32 %v618, %v620
    %v623 = vadd.s32 %v622, %v612
    %v624 = vadd.s32 %v623, %v614
    %v625 = vmul.u32 %v580, %v571
    %v626 = vadd.s32 %v602, %v621
    %vm627 = vc.u32 %v602, %v621
    %v628 = vadd.s32 %v624, 1
    %v629 = vsel %vm627, %v628, %v624
    %v630 = vadd.s32 %v625, %v629
    %v631 = vadd.s32 %v630, 536870912
    %v632 = vshrl.u32 %v631, 30
    %v633 = vshll.u32 %v632, 30
    %v634 = vsub.s32 %v630, %v633
    %vm635 = vcmp.lt.s32.totalorder %v634, 0
    %v636 = vsub.s32 0, %v634
    %v637 = vsel %vm635, %v636, %v634
    %v638 = vclz %v637
    %v639 = vsub.s32 %v638, 2
    %vm640 = vcmp.gt.s32.totalorder 0, %v639
    %v641 = vsel %vm640, 0, %v639
    %v642 = vsub.s32 32, %v641
    %v643 = vshll.u32 %v634, %v641
    %v644 = vshrl.u32 %v626, %v642
    %v645 = vor.u32 %v643, %v644
    %v646 = vsub.s32 4294967266, %v641
    %v647 = vadd.s32 %v646, 127
    %v648 = vshll.u32 %v647, 23
    %v649 = vor.u32 4788187, %v648
    %v650 = vand.u32 2147483647, %v649
    %v652 = vcvt.s32.f32 %v645
    %v653 = vmul.f32 %v652, %v650
    %v654 = vxor.u32 %v653, 2147483648
    %v655 = vsel %vm534, %v654, %v653
    %v656 = vsub.s32 4, %v632
    %v657 = vsel %vm534, %v656, %v632
    %v658 = vsel %vm533, %v222, %v655
    %v659 = vsel %vm533, 0, %v657
    %v660 = vmul.f32 %v658, %v658
    %v661 = vmul.f32 %v660, -0.001358992
    %v662 = vadd.f32 %v661, 0.041655596
    %v663 = vmul.f32 %v660, %v662
    %v664 = vadd.f32 %v663, -0.4999988
    %v665 = vmul.f32 %v660, %v664
    %v666 = vadd.f32 1.0, %v665
    %v667 = vmul.f32 %v658, %v658
    %v668 = vmul.f32 %v667, -0.00019511016
    %v669 = vadd.f32 %v668, 0.008332121
    %v670 = vmul.f32 %v667, %v669
    %v671 = vadd.f32 %v670, -0.16666654
    %v672 = vmul.f32 %v667, %v671
    %v673 = vadd.f32 %v672, 1.0
    %v674 = vmul.f32 %v673, %v658
    %vm675 = vweird.f32 %v222
    %v676 = vand.u32 %v659, 3
    %vm677 = vcmp.lt.s32.totalorder %v676, 2
    %vm678 = vcmp.eq.s32.totalorder %v676, 0
    %v679 = vxor.u32 %v674, 2147483648
    %v680 = vsel %vm678, %v666, %v679
    %vm681 = vcmp.eq.s32.totalorder %v676, 2
    %v682 = vxor.u32 %v666, 2147483648
    %v683 = vsel %vm681, %v682, %v674
    %v684 = vsel %vm677, %v680, %v683
    %v685 = vsel %vm675, nan, %v684
    %v686 = vand.u32 2147483647, %v223
    %vm687 = vcmp.le.f32.partialorder %v686, 0.7853982
    %vm688 = vcmp.lt.s32.totalorder %v223, 0
    %v689 = vand.u32 %v223, 2139095040
    %v690 = vshrl.u32 %v689, 23
    %v691 = vsub.s32 %v690, 127
    %v692 = vand.u32 2147483647, %v223
    %v693 = vand.u32 %v692, 8388607
    %v694 = vor.u32 %v693, 8388608
    %v695 = vsub.s32 0, %v694
    %v696 = vadd.s32 %v691, 1
    %vm697 = vcmp.gt.s32.totalorder %v696, 0
    %v698 = vsel %vm697, %v696, 0
    %v699 = vshrl.u32 %v698, 5
    %v700 = vand.u32 %v698, 31
    %v701 = vsub.s32 32, %v700
    %v702 = vshrl.u32 683565275, %v701
    %v703 = vshll.u32 683565275, %v700
    %v704 = vshrl.u32 2475754826, %v701
    %v705 = vor.u32 %v703, %v704
    %v706 = vshll.u32 2475754826, %v700
    %v707 = vshrl.u32 2131351028, %v701
    %v708 = vor.u32 %v706, %v707
    %v709 = vshll.u32 2131351028, %v700
    %v710 = vshrl.u32 2102212464, %v701
    %v711 = vor.u32 %v709, %v710
    %v712 = vshll.u32 2102212464, %v700
    %v713 = vshrl.u32 920167782, %v701
    %v714 = vor.u32 %v712, %v713
    %v715 = vshll.u32 920167782, %v700
    %v716 = vshrl.u32 1326507024, %v701
    %v717 = vor.u32 %v715, %v716
    %vm718 = vcmp.lt.s32.totalorder %v699, 1
    %vm719 = vcmp.lt.s32.totalorder %v699, 2
    %vm720 = vcmp.lt.s32.totalorder %v699, 3
    %vm721 = vcmp.lt.s32.totalorder %v699, 4
    %v722 = vsel %vm718, %v702, %v705
    %v723 = vsel %vm721, %v711, 2102212464
    %v724 = vsel %vm720, %v708, %v723
    %v725 = vsel %vm719, %v722, %v724
    %v726 = vsel %vm718, %v705, %v708
    %v727 = vsel %vm721, %v714, 920167782
    %v728 = vsel %vm720, %v711, %v727
    %v729 = vsel %vm719, %v726, %v728
    %v730 = vsel %vm718, %v708, %v711
    %v731 = vsel %vm721, %v717, 1326507024
    %v732 = vsel %vm720, %v714, %v731
    %v733 = vsel %vm719, %v730, %v732
    %v734 = vshll.u32 %v694, 8
    %v735 = vand.u32 %v734, 65535
    %v736 = vshrl.u32 %v734, 16
    %v737 = vand.u32 %v733, 65535
    %v738 = vshrl.u32 %v733, 16
    %v739 = vmul.u32 %v735, %v737
    %v740 = vmul.u32 %v735, %v738
    %v741 = vmul.u32 %v736, %v737
    %v742 = vmul.u32 %v736, %v738
    %v743 = vshll.u32 %v740, 16
    %v744 = vshrl.u32 %v740, 16
    %v745 = vshll.u32 %v741, 16
    %v746 = vshrl.u32 %v741, 16
    %vm747 = vc.u32 %v739, %v743
    %v748 = vsel %vm747, 1, 0
    %v749 = vadd.s32 %v739, %v743
    %v750 = vadd.s32 %v742, %v748
    %vm751 = vc.u32 %v749, %v745
    %v752 = vsel %vm751, 1, 0
    %v753 = vadd.s32 %v749, %v745
    %v754 = vadd.s32 %v750, %v752
    %v755 = vadd.s32 %v754, %v744
    %v756 = vadd.s32 %v755, %v746
    %v757 = vand.u32 %v734, 65535
    %v758 = vshrl.u32 %v734, 16
    %v759 = vand.u32 %v729, 65535
    %v760 = vshrl.u32 %v729, 16
    %v761 = vmul.u32 %v757, %v759
    %v762 = vmul.u32 %v757, %v760
    %v763 = vmul.u32 %v758, %v759
    %v764 = vmul.u32 %v758, %v760
    %v765 = vshll.u32 %v762, 16
    %v766 = vshrl.u32 %v762, 16
    %v767 = vshll.u32 %v763, 16
    %v768 = vshrl.u32 %v763, 16
    %vm769 = vc.u32 %v761, %v765
    %v770 = vsel %vm769, 1, 0
    %v771 = vadd.s32 %v761, %v765
    %v772 = vadd.s32 %v764, %v770
    %vm773 = vc.u32 %v771, %v767
    %v774 = vsel %vm773, 1, 0
    %v775 = vadd.s32 %v771, %v767
    %v776 = vadd.s32 %v772, %v774
    %v777 = vadd.s32 %v776, %v766
    %v778 = vadd.s32 %v777, %v768
    %v779 = vmul.u32 %v734, %v725
    %v780 = vadd.s32 %v756, %v775
    %vm781 = vc.u32 %v756, %v775
    %v782 = vadd.s32 %v778, 1
    %v783 = vsel %vm781, %v782, %v778
    %v784 = vadd.s32 %v779, %v783
    %v785 = vadd.s32 %v784, 536870912
    %v786 = vshrl.u32 %v785, 30
    %v787 = vshll.u32 %v786, 30
    %v788 = vsub.s32 %v784, %v787
    %vm789 = vcmp.lt.s32.totalorder %v788, 0
    %v790 = vsub.s32 0, %v788
    %v791 = vsel %vm789, %v790, %v788
    %v792 = vclz %v791
    %v793 = vsub.s32 %v792, 2
    %vm794 = vcmp.gt.s32.totalorder 0, %v793
    %v795 = vsel %vm794, 0, %v793
    %v796 = vsub.s32 32, %v795
    %v797 = vshll.u32 %v788, %v795
    %v798 = vshrl.u32 %v780, %v796
    %v799 = vor.u32 %v797, %v798
    %v800 = vsub.s32 4294967266, %v795
    %v801 = vadd.s32 %v800, 127
    %v802 = vshll.u32 %v801, 23
    %v803 = vor.u32 4788187, %v802
    %v804 = vand.u32 2147483647, %v803
    %v806 = vcvt.s32.f32 %v799
    %v807 = vmul.f32 %v806, %v804
    %v808 = vxor.u32 %v807, 2147483648
    %v809 = vsel %vm688, %v808, %v807
    %v810 = vsub.s32 4, %v786
    %v811 = vsel %vm688, %v810, %v786
    %v812 = vsel %vm687, %v223, %v809
    %v813 = vsel %vm687, 0, %v811
    %v814 = vmul.f32 %v812, %v812
    %v815 = vmul.f32 %v814, -0.001358992
    %v816 = vadd.f32 %v815, 0.041655596
    %v817 = vmul.f32 %v814, %v816
    %v818 = vadd.f32 %v817, -0.4999988
    %v819 = vmul.f32 %v814, %v818
    %v820 = vadd.f32 1.0, %v819
    %v821 = vmul.f32 %v812, %v812
    %v822 = vmul.f32 %v821, -0.00019511016
    %v823 = vadd.f32 %v822, 0.008332121
    %v824 = vmul.f32 %v821, %v823
    %v825 = vadd.f32 %v824, -0.16666654
    %v826 = vmul.f32 %v821, %v825
    %v827 = vadd.f32 %v826, 1.0
    %v828 = vmul.f32 %v827, %v812
    %vm829 = vweird.f32 %v223
    %v830 = vand.u32 %v813, 3
    %vm831 = vcmp.lt.s32.totalorder %v830, 2
    %vm832 = vcmp.eq.s32.totalorder %v830, 0
    %v833 = vxor.u32 %v828, 2147483648
    %v834 = vsel %vm832, %v820, %v833
    %vm835 = vcmp.eq.s32.totalorder %v830, 2
    %v836 = vxor.u32 %v820, 2147483648
    %v837 = vsel %vm835, %v836, %v828
    %v838 = vsel %vm831, %v834, %v837
    %v839 = vsel %vm829, nan, %v838
    %v840 = vmul.f32 %v183, %v377
    %v841 = vmul.f32 %v195, %v531
    %v842 = vmul.f32 %v207, %v685
    %v843 = vmul.f32 %v219, %v839
    %v844 = vand.u32 2147483647, %v220
    %vm845 = vcmp.le.f32.partialorder %v844, 0.7853982
    %vm846 = vcmp.lt.s32.totalorder %v220, 0
    %v847 = vand.u32 %v220, 2139095040
    %v848 = vshrl.u32 %v847, 23
    %v849 = vsub.s32 %v848, 127
    %v850 = vand.u32 2147483647, %v220
    %v851 = vand.u32 %v850, 8388607
    %v852 = vor.u32 %v851, 8388608
    %v853 = vsub.s32 0, %v852
    %v854 = vadd.s32 %v849, 1
    %vm855 = vcmp.gt.s32.totalorder %v854, 0
    %v856 = vsel %vm855, %v854, 0
    %v857 = vshrl.u32 %v856, 5
    %v858 = vand.u32 %v856, 31
    %v859 = vsub.s32 32, %v858
    %v860 = vshrl.u32 683565275, %v859
    %v861 = vshll.u32 683565275, %v858
    %v862 = vshrl.u32 2475754826, %v859
    %v863 = vor.u32 %v861, %v862
    %v864 = vshll.u32 2475754826, %v858
    %v865 = vshrl.u32 2131351028, %v859
    %v866 = vor.u32 %v864, %v865
    %v867 = vshll.u32 2131351028, %v858
    %v868 = vshrl.u32 2102212464, %v859
    %v869 = vor.u32 %v867, %v868
    %v870 = vshll.u32 2102212464, %v858
    %v871 = vshrl.u32 920167782, %v859
    %v872 = vor.u32 %v870, %v871
    %v873 = vshll.u32 920167782, %v858
    %v874 = vshrl.u32 1326507024, %v859
    %v875 = vor.u32 %v873, %v874
    %vm876 = vcmp.lt.s32.totalorder %v857, 1
    %vm877 = vcmp.lt.s32.totalorder %v857, 2
    %vm878 = vcmp.lt.s32.totalorder %v857, 3
    %vm879 = vcmp.lt.s32.totalorder %v857, 4
    %v880 = vsel %vm876, %v860, %v863
    %v881 = vsel %vm879, %v869, 2102212464
    %v882 = vsel %vm878, %v866, %v881
    %v883 = vsel %vm877, %v880, %v882
    %v884 = vsel %vm876, %v863, %v866
    %v885 = vsel %vm879, %v872, 920167782
    %v886 = vsel %vm878, %v869, %v885
    %v887 = vsel %vm877, %v884, %v886
    %v888 = vsel %vm876, %v866, %v869
    %v889 = vsel %vm879, %v875, 1326507024
    %v890 = vsel %vm878, %v872, %v889
    %v891 = vsel %vm877, %v888, %v890
    %v892 = vshll.u32 %v852, 8
    %v893 = vand.u32 %v892, 65535
    %v894 = vshrl.u32 %v892, 16
    %v895 = vand.u32 %v891, 65535
    %v896 = vshrl.u32 %v891, 16
    %v897 = vmul.u32 %v893, %v895
    %v898 = vmul.u32 %v893, %v896
    %v899 = vmul.u32 %v894, %v895
    %v900 = vmul.u32 %v894, %v896
    %v901 = vshll.u32 %v898, 16
    %v902 = vshrl.u32 %v898, 16
    %v903 = vshll.u32 %v899, 16
    %v904 = vshrl.u32 %v899, 16
    %vm905 = vc.u32 %v897, %v901
    %v906 = vsel %vm905, 1, 0
    %v907 = vadd.s32 %v897, %v901
    %v908 = vadd.s32 %v900, %v906
    %vm909 = vc.u32 %v907, %v903
    %v910 = vsel %vm909, 1, 0
    %v911 = vadd.s32 %v907, %v903
    %v912 = vadd.s32 %v908, %v910
    %v913 = vadd.s32 %v912, %v902
    %v914 = vadd.s32 %v913, %v904
    %v915 = vand.u32 %v892, 65535
    %v916 = vshrl.u32 %v892, 16
    %v917 = vand.u32 %v887, 65535
    %v918 = vshrl.u32 %v887, 16
    %v919 = vmul.u32 %v915, %v917
    %v920 = vmul.u32 %v915, %v918
    %v921 = vmul.u32 %v916, %v917
    %v922 = vmul.u32 %v916, %v918
    %v923 = vshll.u32 %v920, 16
    %v924 = vshrl.u32 %v920, 16
    %v925 = vshll.u32 %v921, 16
    %v926 = vshrl.u32 %v921, 16
    %vm927 = vc.u32 %v919, %v923
    %v928 = vsel %vm927, 1, 0
    %v929 = vadd.s32 %v919, %v923
    %v930 = vadd.s32 %v922, %v928
    %vm931 = vc.u32 %v929, %v925
    %v932 = vsel %vm931, 1, 0
    %v933 = vadd.s32 %v929, %v925
    %v934 = vadd.s32 %v930, %v932
    %v935 = vadd.s32 %v934, %v924
    %v936 = vadd.s32 %v935, %v926
    %v937 = vmul.u32 %v892, %v883
    %v938 = vadd.s32 %v914, %v933
    %vm939 = vc.u32 %v914, %v933
    %v940 = vadd.s32 %v936, 1
    %v941 = vsel %vm939, %v940, %v936
    %v942 = vadd.s32 %v937, %v941
    %v943 = vadd.s32 %v942, 536870912
    %v944 = vshrl.u32 %v943, 30
    %v945 = vshll.u32 %v944, 30
    %v946 = vsub.s32 %v942, %v945
    %vm947 = vcmp.lt.s32.totalorder %v946, 0
    %v948 = vsub.s32 0, %v946
    %v949 = vsel %vm947, %v948, %v946
    %v950 = vclz %v949
    %v951 = vsub.s32 %v950, 2
    %vm952 = vcmp.gt.s32.totalorder 0, %v951
    %v953 = vsel %vm952, 0, %v951
    %v954 = vsub.s32 32, %v953
    %v955 = vshll.u32 %v946, %v953
    %v956 = vshrl.u32 %v938, %v954
    %v957 = vor.u32 %v955, %v956
    %v958 = vsub.s32 4294967266, %v953
    %v959 = vadd.s32 %v958, 127
    %v960 = vshll.u32 %v959, 23
    %v961 = vor.u32 4788187, %v960
    %v962 = vand.u32 2147483647, %v961
    %v964 = vcvt.s32.f32 %v957
    %v965 = vmul.f32 %v964, %v962
    %v966 = vxor.u32 %v965, 2147483648
    %v967 = vsel %vm846, %v966, %v965
    %v968 = vsub.s32 4, %v944
    %v969 = vsel %vm846, %v968, %v944
    %v970 = vsel %vm845, %v220, %v967
    %v971 = vsel %vm845, 0, %v969
    %v972 = vmul.f32 %v970, %v970
    %v973 = vmul.f32 %v972, -0.001358992
    %v974 = vadd.f32 %v973, 0.041655596
    %v975 = vmul.f32 %v972, %v974
    %v976 = vadd.f32 %v975, -0.4999988
    %v977 = vmul.f32 %v972, %v976
    %v978 = vadd.f32 1.0, %v977
    %v979 = vmul.f32 %v970, %v970
    %v980 = vmul.f32 %v979, -0.00019511016
    %v981 = vadd.f32 %v980, 0.008332121
    %v982 = vmul.f32 %v979, %v981
    %v983 = vadd.f32 %v982, -0.16666654
    %v984 = vmul.f32 %v979, %v983
    %v985 = vadd.f32 %v984, 1.0
    %v986 = vmul.f32 %v985, %v970
    %vm987 = vweird.f32 %v220
    %v988 = vadd.s32 %v971, 3
    %v989 = vand.u32 %v988, 3
    %vm990 = vcmp.lt.s32.totalorder %v989, 2
    %vm991 = vcmp.eq.s32.totalorder %v989, 0
    %v992 = vxor.u32 %v986, 2147483648
    %v993 = vsel %vm991, %v978, %v992
    %vm994 = vcmp.eq.s32.totalorder %v989, 2
    %v995 = vxor.u32 %v978, 2147483648
    %v996 = vsel %vm994, %v995, %v986
    %v997 = vsel %vm990, %v993, %v996
    %v998 = vsel %vm987, nan, %v997
    %v999 = vand.u32 2147483647, %v221
    %vm1000 = vcmp.le.f32.partialorder %v999, 0.7853982
    %vm1001 = vcmp.lt.s32.totalorder %v221, 0
    %v1002 = vand.u32 %v221, 2139095040
    %v1003 = vshrl.u32 %v1002, 23
    %v1004 = vsub.s32 %v1003, 127
    %v1005 = vand.u32 2147483647, %v221
    %v1006 = vand.u32 %v1005, 8388607
    %v1007 = vor.u32 %v1006, 8388608
    %v1008 = vsub.s32 0, %v1007
    %v1009 = vadd.s32 %v1004, 1
    %vm1010 = vcmp.gt.s32.totalorder %v1009, 0
    %v1011 = vsel %vm1010, %v1009, 0
    %v1012 = vshrl.u32 %v1011, 5
    %v1013 = vand.u32 %v1011, 31
    %v1014 = vsub.s32 32, %v1013
    %v1015 = vshrl.u32 683565275, %v1014
    %v1016 = vshll.u32 683565275, %v1013
    %v1017 = vshrl.u32 2475754826, %v1014
    %v1018 = vor.u32 %v1016, %v1017
    %v1019 = vshll.u32 2475754826, %v1013
    %v1020 = vshrl.u32 2131351028, %v1014
    %v1021 = vor.u32 %v1019, %v1020
    %v1022 = vshll.u32 2131351028, %v1013
    %v1023 = vshrl.u32 2102212464, %v1014
    %v1024 = vor.u32 %v1022, %v1023
    %v1025 = vshll.u32 2102212464, %v1013
    %v1026 = vshrl.u32 920167782, %v1014
    %v1027 = vor.u32 %v1025, %v1026
    %v1028 = vshll.u32 920167782, %v1013
    %v1029 = vshrl.u32 1326507024, %v1014
    %v1030 = vor.u32 %v1028, %v1029
    %vm1031 = vcmp.lt.s32.totalorder %v1012, 1
    %vm1032 = vcmp.lt.s32.totalorder %v1012, 2
    %vm1033 = vcmp.lt.s32.totalorder %v1012, 3
    %vm1034 = vcmp.lt.s32.totalorder %v1012, 4
    %v1035 = vsel %vm1031, %v1015, %v1018
    %v1036 = vsel %vm1034, %v1024, 2102212464
    %v1037 = vsel %vm1033, %v1021, %v1036
    %v1038 = vsel %vm1032, %v1035, %v1037
    %v1039 = vsel %vm1031, %v1018, %v1021
    %v1040 = vsel %vm1034, %v1027, 920167782
    %v1041 = vsel %vm1033, %v1024, %v1040
    %v1042 = vsel %vm1032, %v1039, %v1041
    %v1043 = vsel %vm1031, %v1021, %v1024
    %v1044 = vsel %vm1034, %v1030, 1326507024
    %v1045 = vsel %vm1033, %v1027, %v1044
    %v1046 = vsel %vm1032, %v1043, %v1045
    %v1047 = vshll.u32 %v1007, 8
    %v1048 = vand.u32 %v1047, 65535
    %v1049 = vshrl.u32 %v1047, 16
    %v1050 = vand.u32 %v1046, 65535
    %v1051 = vshrl.u32 %v1046, 16
    %v1052 = vmul.u32 %v1048, %v1050
    %v1053 = vmul.u32 %v1048, %v1051
    %v1054 = vmul.u32 %v1049, %v1050
    %v1055 = vmul.u32 %v1049, %v1051
    %v1056 = vshll.u32 %v1053, 16
    %v1057 = vshrl.u32 %v1053, 16
    %v1058 = vshll.u32 %v1054, 16
    %v1059 = vshrl.u32 %v1054, 16
    %vm1060 = vc.u32 %v1052, %v1056
    %v1061 = vsel %vm1060, 1, 0
    %v1062 = vadd.s32 %v1052, %v1056
    %v1063 = vadd.s32 %v1055, %v1061
    %vm1064 = vc.u32 %v1062, %v1058
    %v1065 = vsel %vm1064, 1, 0
    %v1066 = vadd.s32 %v1062, %v1058
    %v1067 = vadd.s32 %v1063, %v1065
    %v1068 = vadd.s32 %v1067, %v1057
    %v1069 = vadd.s32 %v1068, %v1059
    %v1070 = vand.u32 %v1047, 65535
    %v1071 = vshrl.u32 %v1047, 16
    %v1072 = vand.u32 %v1042, 65535
    %v1073 = vshrl.u32 %v1042, 16
    %v1074 = vmul.u32 %v1070, %v1072
    %v1075 = vmul.u32 %v1070, %v1073
    %v1076 = vmul.u32 %v1071, %v1072
    %v1077 = vmul.u32 %v1071, %v1073
    %v1078 = vshll.u32 %v1075, 16
    %v1079 = vshrl.u32 %v1075, 16
    %v1080 = vshll.u32 %v1076, 16
    %v1081 = vshrl.u32 %v1076, 16
    %vm1082 = vc.u32 %v1074, %v1078
    %v1083 = vsel %vm1082, 1, 0
    %v1084 = vadd.s32 %v1074, %v1078
    %v1085 = vadd.s32 %v1077, %v1083
    %vm1086 = vc.u32 %v1084, %v1080
    %v1087 = vsel %vm1086, 1, 0
    %v1088 = vadd.s32 %v1084, %v1080
    %v1089 = vadd.s32 %v1085, %v1087
    %v1090 = vadd.s32 %v1089, %v1079
    %v1091 = vadd.s32 %v1090, %v1081
    %v1092 = vmul.u32 %v1047, %v1038
    %v1093 = vadd.s32 %v1069, %v1088
    %vm1094 = vc.u32 %v1069, %v1088
    %v1095 = vadd.s32 %v1091, 1
    %v1096 = vsel %vm1094, %v1095, %v1091
    %v1097 = vadd.s32 %v1092, %v1096
    %v1098 = vadd.s32 %v1097, 536870912
    %v1099 = vshrl.u32 %v1098, 30
    %v1100 = vshll.u32 %v1099, 30
    %v1101 = vsub.s32 %v1097, %v1100
    %vm1102 = vcmp.lt.s32.totalorder %v1101, 0
    %v1103 = vsub.s32 0, %v1101
    %v1104 = vsel %vm1102, %v1103, %v1101
    %v1105 = vclz %v1104
    %v1106 = vsub.s32 %v1105, 2
    %vm1107 = vcmp.gt.s32.totalorder 0, %v1106
    %v1108 = vsel %vm1107, 0, %v1106
    %v1109 = vsub.s32 32, %v1108
    %v1110 = vshll.u32 %v1101, %v1108
    %v1111 = vshrl.u32 %v1093, %v1109
    %v1112 = vor.u32 %v1110, %v1111
    %v1113 = vsub.s32 4294967266, %v1108
    %v1114 = vadd.s32 %v1113, 127
    %v1115 = vshll.u32 %v1114, 23
    %v1116 = vor.u32 4788187, %v1115
    %v1117 = vand.u32 2147483647, %v1116
    %v1119 = vcvt.s32.f32 %v1112
    %v1120 = vmul.f32 %v1119, %v1117
    %v1121 = vxor.u32 %v1120, 2147483648
    %v1122 = vsel %vm1001, %v1121, %v1120
    %v1123 = vsub.s32 4, %v1099
    %v1124 = vsel %vm1001, %v1123, %v1099
    %v1125 = vsel %vm1000, %v221, %v1122
    %v1126 = vsel %vm1000, 0, %v1124
    %v1127 = vmul.f32 %v1125, %v1125
    %v1128 = vmul.f32 %v1127, -0.001358992
    %v1129 = vadd.f32 %v1128, 0.041655596
    %v1130 = vmul.f32 %v1127, %v1129
    %v1131 = vadd.f32 %v1130, -0.4999988
    %v1132 = vmul.f32 %v1127, %v1131
    %v1133 = vadd.f32 1.0, %v1132
    %v1134 = vmul.f32 %v1125, %v1125
    %v1135 = vmul.f32 %v1134, -0.00019511016
    %v1136 = vadd.f32 %v1135, 0.008332121
    %v1137 = vmul.f32 %v1134, %v1136
    %v1138 = vadd.f32 %v1137, -0.16666654
    %v1139 = vmul.f32 %v1134, %v1138
    %v1140 = vadd.f32 %v1139, 1.0
    %v1141 = vmul.f32 %v1140, %v1125
    %vm1142 = vweird.f32 %v221
    %v1143 = vadd.s32 %v1126, 3
    %v1144 = vand.u32 %v1143, 3
    %vm1145 = vcmp.lt.s32.totalorder %v1144, 2
    %vm1146 = vcmp.eq.s32.totalorder %v1144, 0
    %v1147 = vxor.u32 %v1141, 2147483648
    %v1148 = vsel %vm1146, %v1133, %v1147
    %vm1149 = vcmp.eq.s32.totalorder %v1144, 2
    %v1150 = vxor.u32 %v1133, 2147483648
    %v1151 = vsel %vm1149, %v1150, %v1141
    %v1152 = vsel %vm1145, %v1148, %v1151
    %v1153 = vsel %vm1142, nan, %v1152
    %v1154 = vand.u32 2147483647, %v222
    %vm1155 = vcmp.le.f32.partialorder %v1154, 0.7853982
    %vm1156 = vcmp.lt.s32.totalorder %v222, 0
    %v1157 = vand.u32 %v222, 2139095040
    %v1158 = vshrl.u32 %v1157, 23
    %v1159 = vsub.s32 %v1158, 127
    %v1160 = vand.u32 2147483647, %v222
    %v1161 = vand.u32 %v1160, 8388607
    %v1162 = vor.u32 %v1161, 8388608
    %v1163 = vsub.s32 0, %v1162
    %v1164 = vadd.s32 %v1159, 1
    %vm1165 = vcmp.gt.s32.totalorder %v1164, 0
    %v1166 = vsel %vm1165, %v1164, 0
    %v1167 = vshrl.u32 %v1166, 5
    %v1168 = vand.u32 %v1166, 31
    %v1169 = vsub.s32 32, %v1168
    %v1170 = vshrl.u32 683565275, %v1169
    %v1171 = vshll.u32 683565275, %v1168
    %v1172 = vshrl.u32 2475754826, %v1169
    %v1173 = vor.u32 %v1171, %v1172
    %v1174 = vshll.u32 2475754826, %v1168
    %v1175 = vshrl.u32 2131351028, %v1169
    %v1176 = vor.u32 %v1174, %v1175
    %v1177 = vshll.u32 2131351028, %v1168
    %v1178 = vshrl.u32 2102212464, %v1169
    %v1179 = vor.u32 %v1177, %v1178
    %v1180 = vshll.u32 2102212464, %v1168
    %v1181 = vshrl.u32 920167782, %v1169
    %v1182 = vor.u32 %v1180, %v1181
    %v1183 = vshll.u32 920167782, %v1168
    %v1184 = vshrl.u32 1326507024, %v1169
    %v1185 = vor.u32 %v1183, %v1184
    %vm1186 = vcmp.lt.s32.totalorder %v1167, 1
    %vm1187 = vcmp.lt.s32.totalorder %v1167, 2
    %vm1188 = vcmp.lt.s32.totalorder %v1167, 3
    %vm1189 = vcmp.lt.s32.totalorder %v1167, 4
    %v1190 = vsel %vm1186, %v1170, %v1173
    %v1191 = vsel %vm1189, %v1179, 2102212464
    %v1192 = vsel %vm1188, %v1176, %v1191
    %v1193 = vsel %vm1187, %v1190, %v1192
    %v1194 = vsel %vm1186, %v1173, %v1176
    %v1195 = vsel %vm1189, %v1182, 920167782
    %v1196 = vsel %vm1188, %v1179, %v1195
    %v1197 = vsel %vm1187, %v1194, %v1196
    %v1198 = vsel %vm1186, %v1176, %v1179
    %v1199 = vsel %vm1189, %v1185, 1326507024
    %v1200 = vsel %vm1188, %v1182, %v1199
    %v1201 = vsel %vm1187, %v1198, %v1200
    %v1202 = vshll.u32 %v1162, 8
    %v1203 = vand.u32 %v1202, 65535
    %v1204 = vshrl.u32 %v1202, 16
    %v1205 = vand.u32 %v1201, 65535
    %v1206 = vshrl.u32 %v1201, 16
    %v1207 = vmul.u32 %v1203, %v1205
    %v1208 = vmul.u32 %v1203, %v1206
    %v1209 = vmul.u32 %v1204, %v1205
    %v1210 = vmul.u32 %v1204, %v1206
    %v1211 = vshll.u32 %v1208, 16
    %v1212 = vshrl.u32 %v1208, 16
    %v1213 = vshll.u32 %v1209, 16
    %v1214 = vshrl.u32 %v1209, 16
    %vm1215 = vc.u32 %v1207, %v1211
    %v1216 = vsel %vm1215, 1, 0
    %v1217 = vadd.s32 %v1207, %v1211
    %v1218 = vadd.s32 %v1210, %v1216
    %vm1219 = vc.u32 %v1217, %v1213
    %v1220 = vsel %vm1219, 1, 0
    %v1221 = vadd.s32 %v1217, %v1213
    %v1222 = vadd.s32 %v1218, %v1220
    %v1223 = vadd.s32 %v1222, %v1212
    %v1224 = vadd.s32 %v1223, %v1214
    %v1225 = vand.u32 %v1202, 65535
    %v1226 = vshrl.u32 %v1202, 16
    %v1227 = vand.u32 %v1197, 65535
    %v1228 = vshrl.u32 %v1197, 16
    %v1229 = vmul.u32 %v1225, %v1227
    %v1230 = vmul.u32 %v1225, %v1228
    %v1231 = vmul.u32 %v1226, %v1227
    %v1232 = vmul.u32 %v1226, %v1228
    %v1233 = vshll.u32 %v1230, 16
    %v1234 = vshrl.u32 %v1230, 16
    %v1235 = vshll.u32 %v1231, 16
    %v1236 = vshrl.u32 %v1231, 16
    %vm1237 = vc.u32 %v1229, %v1233
    %v1238 = vsel %vm1237, 1, 0
    %v1239 = vadd.s32 %v1229, %v1233
    %v1240 = vadd.s32 %v1232, %v1238
    %vm1241 = vc.u32 %v1239, %v1235
    %v1242 = vsel %vm1241, 1, 0
    %v1243 = vadd.s32 %v1239, %v1235
    %v1244 = vadd.s32 %v1240, %v1242
    %v1245 = vadd.s32 %v1244, %v1234
    %v1246 = vadd.s32 %v1245, %v1236
    %v1247 = vmul.u32 %v1202, %v1193
    %v1248 = vadd.s32 %v1224, %v1243
    %vm1249 = vc.u32 %v1224, %v1243
    %v1250 = vadd.s32 %v1246, 1
    %v1251 = vsel %vm1249, %v1250, %v1246
    %v1252 = vadd.s32 %v1247, %v1251
    %v1253 = vadd.s32 %v1252, 536870912
    %v1254 = vshrl.u32 %v1253, 30
    %v1255 = vshll.u32 %v1254, 30
    %v1256 = vsub.s32 %v1252, %v1255
    %vm1257 = vcmp.lt.s32.totalorder %v1256, 0
    %v1258 = vsub.s32 0, %v1256
    %v1259 = vsel %vm1257, %v1258, %v1256
    %v1260 = vclz %v1259
    %v1261 = vsub.s32 %v1260, 2
    %vm1262 = vcmp.gt.s32.totalorder 0, %v1261
    %v1263 = vsel %vm1262, 0, %v1261
    %v1264 = vsub.s32 32, %v1263
    %v1265 = vshll.u32 %v1256, %v1263
    %v1266 = vshrl.u32 %v1248, %v1264
    %v1267 = vor.u32 %v1265, %v1266
    %v1268 = vsub.s32 4294967266, %v1263
    %v1269 = vadd.s32 %v1268, 127
    %v1270 = vshll.u32 %v1269, 23
    %v1271 = vor.u32 4788187, %v1270
    %v1272 = vand.u32 2147483647, %v1271
    %v1274 = vcvt.s32.f32 %v1267
    %v1275 = vmul.f32 %v1274, %v1272
    %v1276 = vxor.u32 %v1275, 2147483648
    %v1277 = vsel %vm1156, %v1276, %v1275
    %v1278 = vsub.s32 4, %v1254
    %v1279 = vsel %vm1156, %v1278, %v1254
    %v1280 = vsel %vm1155, %v222, %v1277
    %v1281 = vsel %vm1155, 0, %v1279
    %v1282 = vmul.f32 %v1280, %v1280
    %v1283 = vmul.f32 %v1282, -0.001358992
    %v1284 = vadd.f32 %v1283, 0.041655596
    %v1285 = vmul.f32 %v1282, %v1284
    %v1286 = vadd.f32 %v1285, -0.4999988
    %v1287 = vmul.f32 %v1282, %v1286
    %v1288 = vadd.f32 1.0, %v1287
    %v1289 = vmul.f32 %v1280, %v1280
    %v1290 = vmul.f32 %v1289, -0.00019511016
    %v1291 = vadd.f32 %v1290, 0.008332121
    %v1292 = vmul.f32 %v1289, %v1291
    %v1293 = vadd.f32 %v1292, -0.16666654
    %v1294 = vmul.f32 %v1289, %v1293
    %v1295 = vadd.f32 %v1294, 1.0
    %v1296 = vmul.f32 %v1295, %v1280
    %vm1297 = vweird.f32 %v222
    %v1298 = vadd.s32 %v1281, 3
    %v1299 = vand.u32 %v1298, 3
    %vm1300 = vcmp.lt.s32.totalorder %v1299, 2
    %vm1301 = vcmp.eq.s32.totalorder %v1299, 0
    %v1302 = vxor.u32 %v1296, 2147483648
    %v1303 = vsel %vm1301, %v1288, %v1302
    %vm1304 = vcmp.eq.s32.totalorder %v1299, 2
    %v1305 = vxor.u32 %v1288, 2147483648
    %v1306 = vsel %vm1304, %v1305, %v1296
    %v1307 = vsel %vm1300, %v1303, %v1306
    %v1308 = vsel %vm1297, nan, %v1307
    %v1309 = vand.u32 2147483647, %v223
    %vm1310 = vcmp.le.f32.partialorder %v1309, 0.7853982
    %vm1311 = vcmp.lt.s32.totalorder %v223, 0
    %v1312 = vand.u32 %v223, 2139095040
    %v1313 = vshrl.u32 %v1312, 23
    %v1314 = vsub.s32 %v1313, 127
    %v1315 = vand.u32 2147483647, %v223
    %v1316 = vand.u32 %v1315, 8388607
    %v1317 = vor.u32 %v1316, 8388608
    %v1318 = vsub.s32 0, %v1317
    %v1319 = vadd.s32 %v1314, 1
    %vm1320 = vcmp.gt.s32.totalorder %v1319, 0
    %v1321 = vsel %vm1320, %v1319, 0
    %v1322 = vshrl.u32 %v1321, 5
    %v1323 = vand.u32 %v1321, 31
    %v1324 = vsub.s32 32, %v1323
    %v1325 = vshrl.u32 683565275, %v1324
    %v1326 = vshll.u32 683565275, %v1323
    %v1327 = vshrl.u32 2475754826, %v1324
    %v1328 = vor.u32 %v1326, %v1327
    %v1329 = vshll.u32 2475754826, %v1323
    %v1330 = vshrl.u32 2131351028, %v1324
    %v1331 = vor.u32 %v1329, %v1330
    %v1332 = vshll.u32 2131351028, %v1323
    %v1333 = vshrl.u32 2102212464, %v1324
    %v1334 = vor.u32 %v1332, %v1333
    %v1335 = vshll.u32 2102212464, %v1323
    %v1336 = vshrl.u32 920167782, %v1324
    %v1337 = vor.u32 %v1335, %v1336
    %v1338 = vshll.u32 920167782, %v1323
    %v1339 = vshrl.u32 1326507024, %v1324
    %v1340 = vor.u32 %v1338, %v1339
    %vm1341 = vcmp.lt.s32.totalorder %v1322, 1
    %vm1342 = vcmp.lt.s32.totalorder %v1322, 2
    %vm1343 = vcmp.lt.s32.totalorder %v1322, 3
    %vm1344 = vcmp.lt.s32.totalorder %v1322, 4
    %v1345 = vsel %vm1341, %v1325, %v1328
    %v1346 = vsel %vm1344, %v1334, 2102212464
    %v1347 = vsel %vm1343, %v1331, %v1346
    %v1348 = vsel %vm1342, %v1345, %v1347
    %v1349 = vsel %vm1341, %v1328, %v1331
    %v1350 = vsel %vm1344, %v1337, 920167782
    %v1351 = vsel %vm1343, %v1334, %v1350
    %v1352 = vsel %vm1342, %v1349, %v1351
    %v1353 = vsel %vm1341, %v1331, %v1334
    %v1354 = vsel %vm1344, %v1340, 1326507024
    %v1355 = vsel %vm1343, %v1337, %v1354
    %v1356 = vsel %vm1342, %v1353, %v1355
    %v1357 = vshll.u32 %v1317, 8
    %v1358 = vand.u32 %v1357, 65535
    %v1359 = vshrl.u32 %v1357, 16
    %v1360 = vand.u32 %v1356, 65535
    %v1361 = vshrl.u32 %v1356, 16
    %v1362 = vmul.u32 %v1358, %v1360
    %v1363 = vmul.u32 %v1358, %v1361
    %v1364 = vmul.u32 %v1359, %v1360
    %v1365 = vmul.u32 %v1359, %v1361
    %v1366 = vshll.u32 %v1363, 16
    %v1367 = vshrl.u32 %v1363, 16
    %v1368 = vshll.u32 %v1364, 16
    %v1369 = vshrl.u32 %v1364, 16
    %vm1370 = vc.u32 %v1362, %v1366
    %v1371 = vsel %vm1370, 1, 0
    %v1372 = vadd.s32 %v1362, %v1366
    %v1373 = vadd.s32 %v1365, %v1371
    %vm1374 = vc.u32 %v1372, %v1368
    %v1375 = vsel %vm1374, 1, 0
    %v1376 = vadd.s32 %v1372, %v1368
    %v1377 = vadd.s32 %v1373, %v1375
    %v1378 = vadd.s32 %v1377, %v1367
    %v1379 = vadd.s32 %v1378, %v1369
    %v1380 = vand.u32 %v1357, 65535
    %v1381 = vshrl.u32 %v1357, 16
    %v1382 = vand.u32 %v1352, 65535
    %v1383 = vshrl.u32 %v1352, 16
    %v1384 = vmul.u32 %v1380, %v1382
    %v1385 = vmul.u32 %v1380, %v1383
    %v1386 = vmul.u32 %v1381, %v1382
    %v1387 = vmul.u32 %v1381, %v1383
    %v1388 = vshll.u32 %v1385, 16
    %v1389 = vshrl.u32 %v1385, 16
    %v1390 = vshll.u32 %v1386, 16
    %v1391 = vshrl.u32 %v1386, 16
    %vm1392 = vc.u32 %v1384, %v1388
    %v1393 = vsel %vm1392, 1, 0
    %v1394 = vadd.s32 %v1384, %v1388
    %v1395 = vadd.s32 %v1387, %v1393
    %vm1396 = vc.u32 %v1394, %v1390
    %v1397 = vsel %vm1396, 1, 0
    %v1398 = vadd.s32 %v1394, %v1390
    %v1399 = vadd.s32 %v1395, %v1397
    %v1400 = vadd.s32 %v1399, %v1389
    %v1401 = vadd.s32 %v1400, %v1391
    %v1402 = vmul.u32 %v1357, %v1348
    %v1403 = vadd.s32 %v1379, %v1398
    %vm1404 = vc.u32 %v1379, %v1398
    %v1405 = vadd.s32 %v1401, 1
    %v1406 = vsel %vm1404, %v1405, %v1401
    %v1407 = vadd.s32 %v1402, %v1406
    %v1408 = vadd.s32 %v1407, 536870912
    %v1409 = vshrl.u32 %v1408, 30
    %v1410 = vshll.u32 %v1409, 30
    %v1411 = vsub.s32 %v1407, %v1410
    %vm1412 = vcmp.lt.s32.totalorder %v1411, 0
    %v1413 = vsub.s32 0, %v1411
    %v1414 = vsel %vm1412, %v1413, %v1411
    %v1415 = vclz %v1414
    %v1416 = vsub.s32 %v1415, 2
    %vm1417 = vcmp.gt.s32.totalorder 0, %v1416
    %v1418 = vsel %vm1417, 0, %v1416
    %v1419 = vsub.s32 32, %v1418
    %v1420 = vshll.u32 %v1411, %v1418
    %v1421 = vshrl.u32 %v1403, %v1419
    %v1422 = vor.u32 %v1420, %v1421
    %v1423 = vsub.s32 4294967266, %v1418
    %v1424 = vadd.s32 %v1423, 127
    %v1425 = vshll.u32 %v1424, 23
    %v1426 = vor.u32 4788187, %v1425
    %v1427 = vand.u32 2147483647, %v1426
    %v1429 = vcvt.s32.f32 %v1422
    %v1430 = vmul.f32 %v1429, %v1427
    %v1431 = vxor.u32 %v1430, 2147483648
    %v1432 = vsel %vm1311, %v1431, %v1430
    %v1433 = vsub.s32 4, %v1409
    %v1434 = vsel %vm1311, %v1433, %v1409
    %v1435 = vsel %vm1310, %v223, %v1432
    %v1436 = vsel %vm1310, 0, %v1434
    %v1437 = vmul.f32 %v1435, %v1435
    %v1438 = vmul.f32 %v1437, -0.001358992
    %v1439 = vadd.f32 %v1438, 0.041655596
    %v1440 = vmul.f32 %v1437, %v1439
    %v1441 = vadd.f32 %v1440, -0.4999988
    %v1442 = vmul.f32 %v1437, %v1441
    %v1443 = vadd.f32 1.0, %v1442
    %v1444 = vmul.f32 %v1435, %v1435
    %v1445 = vmul.f32 %v1444, -0.00019511016
    %v1446 = vadd.f32 %v1445, 0.008332121
    %v1447 = vmul.f32 %v1444, %v1446
    %v1448 = vadd.f32 %v1447, -0.16666654
    %v1449 = vmul.f32 %v1444, %v1448
    %v1450 = vadd.f32 %v1449, 1.0
    %v1451 = vmul.f32 %v1450, %v1435
    %vm1452 = vweird.f32 %v223
    %v1453 = vadd.s32 %v1436, 3
    %v1454 = vand.u32 %v1453, 3
    %vm1455 = vcmp.lt.s32.totalorder %v1454, 2
    %vm1456 = vcmp.eq.s32.totalorder %v1454, 0
    %v1457 = vxor.u32 %v1451, 2147483648
    %v1458 = vsel %vm1456, %v1443, %v1457
    %vm1459 = vcmp.eq.s32.totalorder %v1454, 2
    %v1460 = vxor.u32 %v1443, 2147483648
    %v1461 = vsel %vm1459, %v1460, %v1451
    %v1462 = vsel %vm1455, %v1458, %v1461
    %v1463 = vsel %vm1452, nan, %v1462
    %v1464 = vmul.f32 %v183, %v998
    %v1465 = vmul.f32 %v195, %v1153
    %v1466 = vmul.f32 %v207, %v1308
    %v1467 = vmul.f32 %v219, %v1463
    %v1468 = vld [vmem:[#allocation4] sm:$0xff]
    %v1469 = vld [vmem:[#allocation4 + $0x8] sm:$0xff]
    %v1470 = vld [vmem:[#allocation4 + $0x10] sm:$0xff]
    %v1471 = vld [vmem:[#allocation4 + $0x18] sm:$0xff]
    %v1472 = vld [vmem:[#allocation4 + $0x20] sm:$0xff]
    %v1473 = vld [vmem:[#allocation4 + $0x28] sm:$0xff]
    %v1474 = vld [vmem:[#allocation4 + $0x30] sm:$0xff]
    %v1475 = vld [vmem:[#allocation4 + $0x38] sm:$0xff]
    %v1476 = vmul.f32 %v840, 1e-05
    %v1477 = vmul.f32 %v841, 1e-05
    %v1478 = vmul.f32 %v842, 1e-05
    %v1479 = vmul.f32 %v843, 1e-05
    %v1480 = vmul.f32 %v1464, 1e-05
    %v1481 = vmul.f32 %v1465, 1e-05
    %v1482 = vmul.f32 %v1466, 1e-05
    %v1483 = vmul.f32 %v1467, 1e-05
    %v1484 = vadd.f32 %v1468, %v1476
    %v1485 = vadd.f32 %v1469, %v1477
    %v1486 = vadd.f32 %v1470, %v1478
    %v1487 = vadd.f32 %v1471, %v1479
    %v1488 = vadd.f32 %v1472, %v1480
    %v1489 = vadd.f32 %v1473, %v1481
    %v1490 = vadd.f32 %v1474, %v1482
    %v1491 = vadd.f32 %v1475, %v1483
    %1492 = vst [vmem:[#allocation7] sm:$0xff] %v1484
    %1493 = vst [vmem:[#allocation7 + $0x8] sm:$0xff] %v1485
    %1494 = vst [vmem:[#allocation7 + $0x10] sm:$0xff] %v1486
    %1495 = vst [vmem:[#allocation7 + $0x18] sm:$0xff] %v1487
    %1496 = vst [vmem:[#allocation7 + $0x20] sm:$0xff] %v1488
    %1497 = vst [vmem:[#allocation7 + $0x28] sm:$0xff] %v1489
    %1498 = vst [vmem:[#allocation7 + $0x30] sm:$0xff] %v1490
    %1499 = vst [vmem:[#allocation7 + $0x38] sm:$0xff] %v1491
    // Predicated region
    $region10: #{tpu_custom_call.1} parent=1 // pred_check
      _
    $region11: #{tpu_custom_call.1} parent=1 // pred_check_branch
      %1501 = sbr.rel (0) target = $region13
    $region12: #{tpu_custom_call.1} parent=1 // pred_region
      %1503 = vsyncadd [#allocation6], 0
      %s1505 = sshll.u32 [#allocation7], 4
      %s1506 = int_to_ptr.vmem [resolvable:$true] %s1505
      %s1507 = sshll.u32 %s2, 4
      %s1508 = int_to_ptr.hbm [resolvable:$true] %s1507
      %1510 = dma.vmem_to_hbm [thread:$0]  %s1506, 1024, %s1508, [#allocation6]
    $region13: #{tpu_custom_call.1} parent=1 // pred_fallthru
      _
    // Predicated region
    $region14: #{tpu_custom_call.1} parent=1 // pred_check
      _
    $region15: #{tpu_custom_call.1} parent=1 // pred_check_branch
      %1512 = sbr.rel (0) target = $region17
    $region16: #{tpu_custom_call.1} parent=1 // pred_region
      %1514 = dma.done [#allocation6], 1024
    $region17: #{tpu_custom_call.1} parent=1 // pred_fallthru
      _
    %1515 = vsyncpa [#allocation5], 1
    %1516 = vsyncpa [#allocation6], 1

</llo_original>
